<compile_context>
chip_gen: v5e
topology: v5e:2x2
jax: 0.10.0
libtpu: 0.0.40
codegen_flags: <defaults>
</compile_context>

<pallas_src>
import jax
import jax.numpy as jnp
from jax.experimental import pallas as pl
from jax.experimental.pallas import tpu as pltpu


def _round_up(x: int, m: int) -> int:
    return ((x + m - 1) // m) * m


def _vmem_capacity_bytes() -> int:
    """Per-core VMEM capacity; conservative 64 MiB (v7x) if query fails."""
    try:
        info = pltpu.get_tpu_info()
        cap = int(getattr(info, "vmem_capacity_bytes"))
        if cap > 0:
            return cap
    except Exception:
        pass
    return 64 << 20


def _pick_tn(H: int, I: int, budget_bytes: int) -> int:
    """Keep the whole (bf16) weight resident if it fits the budget, otherwise
    pick a column tile that is a multiple of 128 and divides I."""
    if H * I * 2 <= budget_bytes:
        return I
    divisors_128 = [d for d in range(128, I + 1, 128) if I % d == 0]
    fitting = [d for d in divisors_128 if H * d * 2 <= budget_bytes]
    if fitting:
        return max(fitting)
    if divisors_128:
        return min(divisors_128)
    # TODO(synk): pad I for intermediate sizes with no 128-multiple divisor.
    return I


def _pick_tm(H: int, tn: int, out_bytes: int, vmem_cap: int, wbuf: int) -> int:
    """Largest MXU-friendly row tile whose working set stays well under VMEM."""
    for tm in (512, 256, 128, 64, 32, 16):
        need = (2 * tm * H * 2            # x double buffer (bf16)
                + wbuf * H * tn * 2       # weight buffer(s) (bf16)
                + 2 * tm * tn * out_bytes # output double buffer
                + wbuf * 8 * tn * 4)      # bias (sublane-padded, f32)
        if need <= int(0.55 * vmem_cap):
            return tm
    return 16


def intermediate_kernel(x_ref, w_ref, b_ref, o_ref):
    # bf16 operands, f32 accumulation on the MXU.
    acc = jnp.dot(x_ref[...], w_ref[...], preferred_element_type=jnp.float32)
    acc = acc + b_ref[...]
    # Exact GELU (erf-based), matching ACT2FN["gelu"]; evaluated in f32 so
    # numerics track nn.Linear + GELU closely.
    inv_sqrt2 = jnp.float32(0.7071067811865476)
    out = 0.5 * acc * (1.0 + jax.lax.erf(acc * inv_sqrt2))
    o_ref[...] = out.astype(o_ref.dtype)


def roberta_intermediate(hidden_states, weight_t, bias, *, tm=None, tn=None,
                         out_dtype=jnp.bfloat16):
    """hidden_states: [B, S, H]; weight_t: [H, I] (= dense.weight.T); bias: [I].

    Returns GELU(hidden_states @ weight_t + bias) with shape [B, S, I].
    Output dtype defaults to bfloat16 (downstream dense consumes bf16);
    pass out_dtype=hidden_states.dtype for an exact dtype match.
    """
    B, S, H = hidden_states.shape
    Hw, I = weight_t.shape
    assert Hw == H, (Hw, H)
    M = B * S
    out_bytes = jnp.dtype(out_dtype).itemsize

    # --- device-aware tile selection -----------------------------------------
    vmem_cap = _vmem_capacity_bytes()
    # Resident-weight budget: generous on 128 MiB parts (v5e/v6e), tighter on
    # 64 MiB/TC parts (v7x).
    weight_budget = min(24 << 20, max(8 << 20, vmem_cap // 5))

    tn_eff = _pick_tn(H, I, weight_budget) if tn is None else tn
    assert I % tn_eff == 0, "intermediate_size must divide by the N tile"

    wbuf = 1 if tn_eff == I else 2
    tm_sel = _pick_tm(H, tn_eff, out_bytes, vmem_cap, wbuf) if tm is None else tm
    # 16-row alignment keeps bf16 sublane pairs packed / stores unmasked.
    tm_eff = min(tm_sel, _round_up(M, 16))

    num_m = pl.cdiv(M, tm_eff)
    num_n = I // tn_eff

    # Decode-like shapes: a (1, 1) grid leaves one v7x TensorCore idle; split N
    # so both cores get work (harmless on single-TC parts).
    if num_m == 1 and num_n == 1 and I % 256 == 0:
        tn_eff = I // 2
        num_n = 2

    weight_resident = (tn_eff == I)

    # Grid order: when the weight streams (tn < I), pick whichever order moves
    # fewer extra HBM bytes (M-outer re-fetches the weight num_m times;
    # N-outer re-fetches x num_n times).
    m_outer_extra = (num_m - 1) * H * I   # weight re-fetch elements
    n_outer_extra = (num_n - 1) * M * H   # x re-fetch elements
    m_outer = weight_resident or (m_outer_extra <= n_outer_extra)

    # --- operand prep (bf16 MXU operands, f32 bias) ---------------------------
    # No explicit padding: Pallas masks the partial last M block on store.
    x2 = hidden_states.reshape(M, H).astype(jnp.bfloat16)
    w2 = weight_t.astype(jnp.bfloat16)
    b2 = bias.astype(jnp.float32).reshape(1, I)

    # --- VMEM budget / cost hints ---------------------------------------------
    wbuf = 1 if weight_resident else 2
    need = (2 * tm_eff * H * 2 + wbuf * H * tn_eff * 2
            + 2 * tm_eff * tn_eff * out_bytes + wbuf * 8 * tn_eff * 4)
    vmem_limit = int(min(max(need * 5 // 4 + (2 << 20), 16 << 20),
                         int(0.7 * vmem_cap)))

    if weight_resident:
        w_bytes, x_bytes = H * I * 2, M * H * 2
    elif m_outer:
        w_bytes, x_bytes = num_m * H * I * 2, M * H * 2
    else:
        w_bytes, x_bytes = H * I * 2, num_n * M * H * 2
    cost = pl.CostEstimate(
        flops=2 * M * H * I,
        transcendentals=M * I,
        bytes_accessed=x_bytes + w_bytes + M * I * out_bytes + I * 4,
    )

    compiler_params = pltpu.CompilerParams(
        dimension_semantics=("parallel", "parallel"),
        vmem_limit_bytes=vmem_limit,
        # Fuse the reshape/bf16-cast producer of x (and of the weight when it
        # is fetched only once) into the pallas_call -- avoids materializing
        # bf16 copies in HBM.
        allow_input_fusion=[True, bool(weight_resident), False],
    )

    def _call(single_buffer_const: bool):
        const_kwargs = (dict(pipeline_mode=pl.Buffered(1))
                        if single_buffer_const else {})
        if m_outer:
            grid = (num_m, num_n)
            x_spec = pl.BlockSpec((tm_eff, H), lambda i, j: (i, 0))
            w_spec = pl.BlockSpec((H, tn_eff), lambda i, j: (0, j), **const_kwargs)
            b_spec = pl.BlockSpec((1, tn_eff), lambda i, j: (0, j), **const_kwargs)
            o_spec = pl.BlockSpec((tm_eff, tn_eff), lambda i, j: (i, j))
        else:
            grid = (num_n, num_m)
            x_spec = pl.BlockSpec((tm_eff, H), lambda j, i: (i, 0))
            w_spec = pl.BlockSpec((H, tn_eff), lambda j, i: (0, j), **const_kwargs)
            b_spec = pl.BlockSpec((1, tn_eff), lambda j, i: (0, j), **const_kwargs)
            o_spec = pl.BlockSpec((tm_eff, tn_eff), lambda j, i: (i, j))

        return pl.pallas_call(
            intermediate_kernel,
            out_shape=jax.ShapeDtypeStruct((M, I), out_dtype),
            grid_spec=pltpu.PrefetchScalarGridSpec(
                num_scalar_prefetch=0,
                grid=grid,
                in_specs=[x_spec, w_spec, b_spec],
                out_specs=o_spec,
            ),
            compiler_params=compiler_params,
            cost_estimate=cost,
        )(x2, w2, b2)

    if weight_resident:
        # Single-buffer the never-changing weight/bias blocks; fall back to the
        # default double-buffered pipeline if this build rejects pipeline_mode.
        try:
            out = _call(True)
        except Exception:
            out = _call(False)
    else:
        out = _call(False)

    return out.reshape(B, S, I)


if __name__ == "__main__":
    # Small config consistent with RobertaIntermediate:
    #   hidden_size=32, intermediate_size=128 (4x), batch=2, seq=8
    B, S, H, I = 2, 8, 32, 128

    key = jax.random.PRNGKey(0)
    k_x, k_w, k_b = jax.random.split(key, 3)

    x = jax.random.normal(k_x, (B, S, H), dtype=jnp.float32)
    # Deterministic synthetic parameters (nn.Linear weight is [out, in]).
    weight = jax.random.normal(k_w, (I, H), dtype=jnp.float32) * 0.02
    bias = jax.random.normal(k_b, (I,), dtype=jnp.float32) * 0.02

    weight_t = weight.T  # (H, I) so the kernel computes x @ W^T + b

    out = roberta_intermediate(x, weight_t, bias)
    out = jax.block_until_ready(out)

    # Pure-JAX reference with the same bf16-operand / f32-accumulation recipe.
    xr = x.reshape(B * S, H).astype(jnp.bfloat16)
    wr = weight_t.astype(jnp.bfloat16)
    ref = jnp.dot(xr, wr, preferred_element_type=jnp.float32) + bias
    ref = 0.5 * ref * (1.0 + jax.lax.erf(ref * jnp.float32(0.7071067811865476)))
    ref = ref.reshape(B, S, I)

    assert out.shape == (B, S, I), out.shape
    assert out.dtype == jnp.bfloat16, out.dtype
    err = float(jnp.max(jnp.abs(out.astype(jnp.float32) - ref.astype(jnp.float32))))
    assert err < 2e-2, err

    print("KERNEL_OK")
</pallas_src>

<mosaic_0001>
module attributes {stable_mosaic.version = 11 : i64} {
  func.func @intermediate_kernel(%arg0: i32, %arg1: i32, %arg2: memref<16x32xbf16, #tpu.memory_space<vmem>>, %arg3: memref<32x128xbf16, #tpu.memory_space<vmem>>, %arg4: memref<1x128xf32, #tpu.memory_space<vmem>>, %arg5: memref<16x128xbf16, #tpu.memory_space<vmem>>) attributes {dimension_semantics = [#tpu.dimension_semantics<parallel>, #tpu.dimension_semantics<parallel>], iteration_bounds = array<i64: 1, 1>, scalar_prefetch = 0 : i64, scratch_operands = 0 : i64, tpu.core_type = #tpu.core_type<tc>, window_params = [{transform_indices = @transform_0, window_bounds = array<i64: 16, 32>}, {pipeline_mode = #tpu.pipeline_mode<synchronous>, transform_indices = @transform_1, window_bounds = array<i64: 32, 128>}, {pipeline_mode = #tpu.pipeline_mode<synchronous>, transform_indices = @transform_2, window_bounds = array<i64: 1, 128>}, {transform_indices = @transform_3, window_bounds = array<i64: 16, 128>}]} {
    %c0 = arith.constant 0 : index
    %c0_0 = arith.constant 0 : index
    %0 = vector.load %arg2[%c0, %c0_0] : memref<16x32xbf16, #tpu.memory_space<vmem>>, vector<16x32xbf16>
    %c0_1 = arith.constant 0 : index
    %c0_2 = arith.constant 0 : index
    %1 = vector.load %arg3[%c0_1, %c0_2] : memref<32x128xbf16, #tpu.memory_space<vmem>>, vector<32x128xbf16>
    %cst = arith.constant dense<0.000000e+00> : vector<16x128xf32>
    %2 = tpu.matmul %0, %1, %cst {dimension_numbers = #tpu.dot_dimension_numbers<[1], [0], [0], [1], [0, 0, 1, 1], [], []>} : vector<16x32xbf16>, vector<32x128xbf16>, vector<16x128xf32> -> vector<16x128xf32>
    %c0_3 = arith.constant 0 : index
    %c0_4 = arith.constant 0 : index
    %3 = vector.load %arg4[%c0_3, %c0_4] : memref<1x128xf32, #tpu.memory_space<vmem>>, vector<1x128xf32>
    %4 = vector.broadcast %3 : vector<1x128xf32> to vector<16x128xf32>
    %5 = arith.addf %2, %4 : vector<16x128xf32>
    %cst_5 = arith.constant 5.000000e-01 : f32
    %6 = vector.broadcast %cst_5 : f32 to vector<16x128xf32>
    %7 = arith.mulf %6, %5 : vector<16x128xf32>
    %cst_6 = arith.constant 0.707106769 : f32
    %8 = vector.broadcast %cst_6 : f32 to vector<16x128xf32>
    %9 = arith.mulf %5, %8 : vector<16x128xf32>
    %10 = math.erf %9 : vector<16x128xf32>
    %cst_7 = arith.constant 1.000000e+00 : f32
    %11 = vector.broadcast %cst_7 : f32 to vector<16x128xf32>
    %12 = arith.addf %11, %10 : vector<16x128xf32>
    %13 = arith.mulf %7, %12 : vector<16x128xf32>
    %14 = arith.truncf %13 : vector<16x128xf32> to vector<16x128xbf16>
    %c0_8 = arith.constant 0 : index
    %c0_9 = arith.constant 0 : index
    %15 = vector.load %arg5[%c0_8, %c0_9] : memref<16x128xbf16, #tpu.memory_space<vmem>>, vector<16x128xbf16>
    tpu.vector_store %arg5[%c0_8, %c0_9], %14 {strides = array<i32>} : memref<16x128xbf16, #tpu.memory_space<vmem>>, vector<16x128xbf16>,
    return
  }
  func.func @transform_0(%arg0: i32, %arg1: i32) -> (i32, i32) {
    %c0_i32 = arith.constant 0 : i32
    %c0_i32_0 = arith.constant 0 : i32
    return %arg0, %c0_i32 : i32, i32
  }
  func.func @transform_1(%arg0: i32, %arg1: i32) -> (i32, i32) {
    %c0_i32 = arith.constant 0 : i32
    %c0_i32_0 = arith.constant 0 : i32
    return %c0_i32, %arg1 : i32, i32
  }
  func.func @transform_2(%arg0: i32, %arg1: i32) -> (i32, i32) {
    %c0_i32 = arith.constant 0 : i32
    %c0_i32_0 = arith.constant 0 : i32
    return %c0_i32, %arg1 : i32, i32
  }
  func.func @transform_3(%arg0: i32, %arg1: i32) -> (i32, i32) {
    %c0_i32 = arith.constant 0 : i32
    return %arg0, %arg1 : i32, i32
  }
}

module attributes {stable_mosaic.version = 11 : i64} {
  func.func @intermediate_kernel(%arg0: i32, %arg1: i32, %arg2: memref<16x32xbf16, #tpu.memory_space<vmem>>, %arg3: memref<32x128xbf16, #tpu.memory_space<vmem>>, %arg4: memref<1x128xf32, #tpu.memory_space<vmem>>, %arg5: memref<16x128xbf16, #tpu.memory_space<vmem>>) attributes {dimension_semantics = [#tpu.dimension_semantics<parallel>, #tpu.dimension_semantics<parallel>], iteration_bounds = array<i64: 1, 1>, scalar_prefetch = 0 : i64, scratch_operands = 0 : i64, tpu.core_type = #tpu.core_type<tc>, window_params = [{transform_indices = @transform_0, window_bounds = array<i64: 16, 32>}, {transform_indices = @transform_1, window_bounds = array<i64: 32, 128>}, {transform_indices = @transform_2, window_bounds = array<i64: 1, 128>}, {transform_indices = @transform_3, window_bounds = array<i64: 16, 128>}]} {
    %c0 = arith.constant 0 : index
    %c0_0 = arith.constant 0 : index
    %0 = vector.load %arg2[%c0, %c0_0] : memref<16x32xbf16, #tpu.memory_space<vmem>>, vector<16x32xbf16>
    %c0_1 = arith.constant 0 : index
    %c0_2 = arith.constant 0 : index
    %1 = vector.load %arg3[%c0_1, %c0_2] : memref<32x128xbf16, #tpu.memory_space<vmem>>, vector<32x128xbf16>
    %cst = arith.constant dense<0.000000e+00> : vector<16x128xf32>
    %2 = tpu.matmul %0, %1, %cst {dimension_numbers = #tpu.dot_dimension_numbers<[1], [0], [0], [1], [0, 0, 1, 1], [], []>} : vector<16x32xbf16>, vector<32x128xbf16>, vector<16x128xf32> -> vector<16x128xf32>
    %c0_3 = arith.constant 0 : index
    %c0_4 = arith.constant 0 : index
    %3 = vector.load %arg4[%c0_3, %c0_4] : memref<1x128xf32, #tpu.memory_space<vmem>>, vector<1x128xf32>
    %4 = vector.broadcast %3 : vector<1x128xf32> to vector<16x128xf32>
    %5 = arith.addf %2, %4 : vector<16x128xf32>
    %cst_5 = arith.constant 5.000000e-01 : f32
    %6 = vector.broadcast %cst_5 : f32 to vector<16x128xf32>
    %7 = arith.mulf %6, %5 : vector<16x128xf32>
    %cst_6 = arith.constant 0.707106769 : f32
    %8 = vector.broadcast %cst_6 : f32 to vector<16x128xf32>
    %9 = arith.mulf %5, %8 : vector<16x128xf32>
    %10 = math.erf %9 : vector<16x128xf32>
    %cst_7 = arith.constant 1.000000e+00 : f32
    %11 = vector.broadcast %cst_7 : f32 to vector<16x128xf32>
    %12 = arith.addf %11, %10 : vector<16x128xf32>
    %13 = arith.mulf %7, %12 : vector<16x128xf32>
    %14 = arith.truncf %13 : vector<16x128xf32> to vector<16x128xbf16>
    %c0_8 = arith.constant 0 : index
    %c0_9 = arith.constant 0 : index
    %15 = vector.load %arg5[%c0_8, %c0_9] : memref<16x128xbf16, #tpu.memory_space<vmem>>, vector<16x128xbf16>
    tpu.vector_store %arg5[%c0_8, %c0_9], %14 {strides = array<i32>} : memref<16x128xbf16, #tpu.memory_space<vmem>>, vector<16x128xbf16>,
    return
  }
  func.func @transform_0(%arg0: i32, %arg1: i32) -> (i32, i32) {
    %c0_i32 = arith.constant 0 : i32
    %c0_i32_0 = arith.constant 0 : i32
    return %arg0, %c0_i32 : i32, i32
  }
  func.func @transform_1(%arg0: i32, %arg1: i32) -> (i32, i32) {
    %c0_i32 = arith.constant 0 : i32
    %c0_i32_0 = arith.constant 0 : i32
    return %c0_i32, %arg1 : i32, i32
  }
  func.func @transform_2(%arg0: i32, %arg1: i32) -> (i32, i32) {
    %c0_i32 = arith.constant 0 : i32
    %c0_i32_0 = arith.constant 0 : i32
    return %c0_i32, %arg1 : i32, i32
  }
  func.func @transform_3(%arg0: i32, %arg1: i32) -> (i32, i32) {
    %c0_i32 = arith.constant 0 : i32
    return %arg0, %arg1 : i32, i32
  }
}

</mosaic_0001>

<llo_original>
// kernel: tpu_custom_call.1
$region0: #{tpu_custom_call.1}
  #allocation0 [shape = 'u32[]', space=smem, size = 0x4, offset = 0x4, fixed_abs, tag = 'smem constant byte address 0x4 - core index']
  #allocation1 [shape = 'u32[72,128]{1,0:T(1,128)}', space=vmem, size = 0x9000, scoped, tag = 'internal scratch']
  %s0 = inlined_call_operand.hbm [shape: bf16[16,32], index: 0, kind: input, shape index: {}]
  %s1 = inlined_call_operand.hbm [shape: bf16[32,128], index: 1, kind: input, shape index: {}]
  %s2 = inlined_call_operand.vmem [shape: f32[1,128], index: 2, kind: input, shape index: {}]
  %s3 = inlined_call_operand.hbm [shape: bf16[16,128], index: 3, kind: output, shape index: {}]
  %s4 = sld [smem:[#allocation0]]
  $region30: #{tpu_custom_call.1} parent=0
    _
  %s6 = ssub.s32 1, %s4
  %s7 = scalar_select 0, %s6, %s4
  $region1: #{tpu_custom_call.1} parent=0
    #allocation2 [shape = 'u8[4096]{0}', space=vmem, size = 0x1000, scoped, tag = 'input window, operand 0, single buffered']
    #allocation3 [shape = 's32[1]{0}', space=sflag, size = 0x4, scoped, tag = 'scoped memory for tpu_custom_call.1']
    #allocation4 [shape = 's32[1]{0}', space=sflag, size = 0x4, scoped, tag = 'scoped memory for tpu_custom_call.1']
    #allocation5 [shape = 'u8[8192]{0}', space=vmem, size = 0x2000, scoped, tag = 'input window, operand 1, single buffered']
    #allocation6 [shape = 's32[1]{0}', space=sflag, size = 0x4, scoped, tag = 'scoped memory for tpu_custom_call.1']
    #allocation7 [shape = 'u8[4096]{0}', space=vmem, size = 0x1000, scoped, tag = 'output window, operand 0, single buffered']
    %8 = vsyncpa [#allocation3], 0
    %9 = vsyncpa [#allocation6], 0
    %10 = vsyncpa [#allocation4], 0
    // Predicated region
    $region2: #{tpu_custom_call.1} parent=1 // pred_check
      _
    $region3: #{tpu_custom_call.1} parent=1 // pred_check_branch
      %12 = sbr.rel (0) target = $region5
    $region4: #{tpu_custom_call.1} parent=1 // pred_region
      %14 = vsyncadd [#allocation3], 0
      %s15 = sshll.u32 %s0, 4
      %s16 = int_to_ptr.hbm [resolvable:$true] %s15
      %s17 = sshll.u32 [#allocation2], 4
      %s18 = int_to_ptr.vmem [resolvable:$true] %s17
      %23 = dma.hbm_to_vmem [thread:$0]  %s16, 128, %s18, [#allocation3], 64, 64, 4
    $region5: #{tpu_custom_call.1} parent=1 // pred_fallthru
      _
    // Predicated region
    $region6: #{tpu_custom_call.1} parent=1 // pred_check
      _
    $region7: #{tpu_custom_call.1} parent=1 // pred_check_branch
      %25 = sbr.rel (0) target = $region9
    $region8: #{tpu_custom_call.1} parent=1 // pred_region
      %27 = vsyncadd [#allocation6], 0
      %s28 = sshll.u32 %s1, 4
      %s29 = int_to_ptr.hbm [resolvable:$true] %s28
      %s30 = sshll.u32 [#allocation5], 4
      %s31 = int_to_ptr.vmem [resolvable:$true] %s30
      %36 = dma.hbm_to_vmem [thread:$0]  %s29, 256, %s31, [#allocation6], 64, 64, 4
    $region9: #{tpu_custom_call.1} parent=1 // pred_fallthru
      _
    // Predicated region
    $region10: #{tpu_custom_call.1} parent=1 // pred_check
      _
    $region11: #{tpu_custom_call.1} parent=1 // pred_check_branch
      %38 = sbr.rel (0) target = $region13
    $region12: #{tpu_custom_call.1} parent=1 // pred_region
      _
    $region13: #{tpu_custom_call.1} parent=1 // pred_fallthru
      _
    // Predicated region
    $region14: #{tpu_custom_call.1} parent=1 // pred_check
      _
    $region15: #{tpu_custom_call.1} parent=1 // pred_check_branch
      %40 = sbr.rel (0) target = $region17
    $region16: #{tpu_custom_call.1} parent=1 // pred_region
      %42 = dma.done [#allocation3], 128
    $region17: #{tpu_custom_call.1} parent=1 // pred_fallthru
      _
    // Predicated region
    $region18: #{tpu_custom_call.1} parent=1 // pred_check
      _
    $region19: #{tpu_custom_call.1} parent=1 // pred_check_branch
      %44 = sbr.rel (0) target = $region21
    $region20: #{tpu_custom_call.1} parent=1 // pred_region
      %46 = dma.done [#allocation6], 256
    $region21: #{tpu_custom_call.1} parent=1 // pred_fallthru
      _
    %v48 = vld [vmem:[#allocation2] sm:$0xf]
    %v49 = vld [vmem:[#allocation2 + $0x4] sm:$0xf]
    %v50 = vld [vmem:[#allocation5] sm:$0xf]
    %v51 = vld [vmem:[#allocation5 + $0x4] sm:$0xf]
    %v52 = vld [vmem:[#allocation5 + $0x8] sm:$0xf]
    %v53 = vld [vmem:[#allocation5 + $0xc] sm:$0xf]
    %v54 = vld [vmem:[%s2] sm:$0x1]
    %v56 = vperm.slane %v54, 0
    %v60 = vunpack.c.l.b16 %v48
    %v61 = vunpack.c.l.b16 %v49
    %v62 = vpack.c.b16 %v61, %v60
    %v67 = vunpack.c.l.b16 %v50
    %v68 = vunpack.c.l.b16 %v51
    %v69 = vunpack.c.l.b16 %v52
    %v70 = vunpack.c.l.b16 %v53
    %v71 = vpack.c.b16 %v68, %v67
    %v72 = vpack.c.b16 %v70, %v69
    %vm75 = vcmask 261120
    %v77 = vsel %vm75, %v62, 0
    %79 = vmatpush.bf16.msra.mxu0 0
    %80 = vmatpush.bf16.msra.mxu0 0
    %81 = vmatpush.bf16.msra.mxu0 0
    %82 = vmatpush.bf16.msra.mxu0 0
    %83 = vmatpush.bf16.msra.mxu0 0
    %84 = vmatpush.bf16.msra.mxu0 0
    %85 = vmatpush.bf16.msra.mxu0 %v72
    %86 = vmatpush.bf16.msra.mxu0 %v71
    %87 = vmatmul.bf16.gmra.mxu0 %v77
    %v88 = vpop.f32.mrf.mxu0
    %v89 = vadd.f32 %v56, %v88
    %v90 = vpop.f32.mrf.mxu0
    %v91 = vadd.f32 %v56, %v90
    %92 = vdwg.mxu0
    %v93 = vmul.f32 %v89, 0.5
    %v94 = vmul.f32 %v91, 0.5
    %v95 = vmul.f32 %v89, 0.70710677
    %v96 = vmul.f32 %v91, 0.70710677
    %v97 = vmul.f32 %v95, %v95
    %v98 = vmin.f32 16.0, %v97
    %v99 = vmul.f32 %v98, 2.1237322e-06
    %v100 = vadd.f32 %v99, 0.00028619796
    %v101 = vmul.f32 %v98, %v100
    %v102 = vadd.f32 %v101, 0.0036580483
    %v103 = vmul.f32 %v98, %v102
    %v104 = vadd.f32 %v103, 0.05243302
    %v105 = vmul.f32 %v98, %v104
    %v106 = vadd.f32 %v105, 0.18741608
    %v107 = vmul.f32 %v98, %v106
    %v108 = vadd.f32 %v107, 1.1283791
    %v109 = vmul.f32 %v95, %v108
    %v110 = vmul.f32 %v98, 3.8918573e-05
    %v111 = vadd.f32 %v110, 0.001143296
    %v112 = vmul.f32 %v98, %v111
    %v113 = vadd.f32 %v112, 0.014752088
    %v114 = vmul.f32 %v98, %v113
    %v115 = vadd.f32 %v114, 0.112945676
    %v116 = vmul.f32 %v98, %v115
    %v117 = vadd.f32 %v116, 0.4994258
    %v118 = vmul.f32 %v98, %v117
    %v119 = vadd.f32 %v118, 1.0
    %v120 = vrcp.pop %v119
    %v121 = vmul.f32 %v119, %v120
    %v122 = vsub.f32 1.0, %v121
    %v123 = vmul.f32 %v120, %v122
    %v124 = vadd.f32 %v120, %v123
    %vm125 = vweird.f32 %v119
    %vm126 = vweird.f32 %v120
    %vm127 = vmor %vm125, %vm126
    %v128 = vsel %vm127, %v120, %v124
    %v129 = vand.u32 2147483647, %v119
    %vm130 = vcmp.eq.f32.partialorder %v129, 8.507059e+37
    %v131 = vand.u32 %v119, 2147483648
    %v132 = vor.u32 1.1754944e-38, %v131
    %v133 = vsel %vm130, %v132, %v128
    %v134 = vmul.f32 %v109, %v133
    %v135 = vmin.f32 %v134, 1.0
    %v136 = vmax.f32 %v135, -1.0
    %v137 = vmul.f32 %v96, %v96
    %v138 = vmin.f32 16.0, %v137
    %v139 = vmul.f32 %v138, 2.1237322e-06
    %v140 = vadd.f32 %v139, 0.00028619796
    %v141 = vmul.f32 %v138, %v140
    %v142 = vadd.f32 %v141, 0.0036580483
    %v143 = vmul.f32 %v138, %v142
    %v144 = vadd.f32 %v143, 0.05243302
    %v145 = vmul.f32 %v138, %v144
    %v146 = vadd.f32 %v145, 0.18741608
    %v147 = vmul.f32 %v138, %v146
    %v148 = vadd.f32 %v147, 1.1283791
    %v149 = vmul.f32 %v96, %v148
    %v150 = vmul.f32 %v138, 3.8918573e-05
    %v151 = vadd.f32 %v150, 0.001143296
    %v152 = vmul.f32 %v138, %v151
    %v153 = vadd.f32 %v152, 0.014752088
    %v154 = vmul.f32 %v138, %v153
    %v155 = vadd.f32 %v154, 0.112945676
    %v156 = vmul.f32 %v138, %v155
    %v157 = vadd.f32 %v156, 0.4994258
    %v158 = vmul.f32 %v138, %v157
    %v159 = vadd.f32 %v158, 1.0
    %v160 = vrcp.pop %v159
    %v161 = vmul.f32 %v159, %v160
    %v162 = vsub.f32 1.0, %v161
    %v163 = vmul.f32 %v160, %v162
    %v164 = vadd.f32 %v160, %v163
    %vm165 = vweird.f32 %v159
    %vm166 = vweird.f32 %v160
    %vm167 = vmor %vm165, %vm166
    %v168 = vsel %vm167, %v160, %v164
    %v169 = vand.u32 2147483647, %v159
    %vm170 = vcmp.eq.f32.partialorder %v169, 8.507059e+37
    %v171 = vand.u32 %v159, 2147483648
    %v172 = vor.u32 1.1754944e-38, %v171
    %v173 = vsel %vm170, %v172, %v168
    %v174 = vmul.f32 %v149, %v173
    %v175 = vmin.f32 %v174, 1.0
    %v176 = vmax.f32 %v175, -1.0
    %v177 = vadd.f32 %v136, 1.0
    %v178 = vadd.f32 %v176, 1.0
    %v179 = vmul.f32 %v93, %v177
    %v180 = vmul.f32 %v94, %v178
    %v181 = vpack.c.bf16 %v179, %v179
    %v182 = vpack.c.bf16 %v180, %v180
    %183 = vst [vmem:[#allocation7] sm:$0xf] %v181
    %184 = vst [vmem:[#allocation7 + $0x4] sm:$0xf] %v182
    // Predicated region
    $region22: #{tpu_custom_call.1} parent=1 // pred_check
      _
    $region23: #{tpu_custom_call.1} parent=1 // pred_check_branch
      %186 = sbr.rel (0) target = $region25
    $region24: #{tpu_custom_call.1} parent=1 // pred_region
      %188 = vsyncadd [#allocation4], 0
      %s189 = sshll.u32 [#allocation7], 4
      %s190 = int_to_ptr.vmem [resolvable:$true] %s189
      %s191 = sshll.u32 %s3, 4
      %s192 = int_to_ptr.hbm [resolvable:$true] %s191
      %197 = dma.vmem_to_hbm [thread:$0]  %s190, 128, %s192, [#allocation4], 64, 64, 4
    $region25: #{tpu_custom_call.1} parent=1 // pred_fallthru
      _
    // Predicated region
    $region26: #{tpu_custom_call.1} parent=1 // pred_check
      _
    $region27: #{tpu_custom_call.1} parent=1 // pred_check_branch
      %199 = sbr.rel (0) target = $region29
    $region28: #{tpu_custom_call.1} parent=1 // pred_region
      %201 = dma.done [#allocation4], 128
    $region29: #{tpu_custom_call.1} parent=1 // pred_fallthru
      _
    %202 = vsyncpa [#allocation3], 1
    %203 = vsyncpa [#allocation6], 1
    %204 = vsyncpa [#allocation4], 1

// kernel: tpu_custom_call.1
$region0: #{tpu_custom_call.1}
  #allocation0 [shape = 'u32[]', space=smem, size = 0x4, offset = 0x4, fixed_abs, tag = 'smem constant byte address 0x4 - core index']
  #allocation1 [shape = 'u32[72,128]{1,0:T(1,128)}', space=vmem, size = 0x9000, scoped, tag = 'internal scratch']
  %s0 = inlined_call_operand.hbm [shape: bf16[16,32], index: 0, kind: input, shape index: {}]
  %s1 = inlined_call_operand.hbm [shape: bf16[32,128], index: 1, kind: input, shape index: {}]
  %s2 = inlined_call_operand.vmem [shape: f32[1,128], index: 2, kind: input, shape index: {}]
  %s3 = inlined_call_operand.hbm [shape: bf16[16,128], index: 3, kind: output, shape index: {}]
  %s4 = sld [smem:[#allocation0]]
  $region30: #{tpu_custom_call.1} parent=0
    _
  %s6 = ssub.s32 1, %s4
  %s7 = scalar_select 0, %s6, %s4
  $region1: #{tpu_custom_call.1} parent=0
    #allocation2 [shape = 'u8[4096]{0}', space=vmem, size = 0x1000, scoped, tag = 'input window, operand 0, single buffered']
    #allocation3 [shape = 's32[1]{0}', space=sflag, size = 0x4, scoped, tag = 'scoped memory for tpu_custom_call.1']
    #allocation4 [shape = 's32[1]{0}', space=sflag, size = 0x4, scoped, tag = 'scoped memory for tpu_custom_call.1']
    #allocation5 [shape = 'u8[8192]{0}', space=vmem, size = 0x2000, scoped, tag = 'input window, operand 1, single buffered']
    #allocation6 [shape = 's32[1]{0}', space=sflag, size = 0x4, scoped, tag = 'scoped memory for tpu_custom_call.1']
    #allocation7 [shape = 'u8[4096]{0}', space=vmem, size = 0x1000, scoped, tag = 'output window, operand 0, single buffered']
    %8 = vsyncpa [#allocation3], 0
    %9 = vsyncpa [#allocation6], 0
    %10 = vsyncpa [#allocation4], 0
    // Predicated region
    $region2: #{tpu_custom_call.1} parent=1 // pred_check
      _
    $region3: #{tpu_custom_call.1} parent=1 // pred_check_branch
      %12 = sbr.rel (0) target = $region5
    $region4: #{tpu_custom_call.1} parent=1 // pred_region
      %14 = vsyncadd [#allocation3], 0
      %s15 = sshll.u32 %s0, 4
      %s16 = int_to_ptr.hbm [resolvable:$true] %s15
      %s17 = sshll.u32 [#allocation2], 4
      %s18 = int_to_ptr.vmem [resolvable:$true] %s17
      %23 = dma.hbm_to_vmem [thread:$0]  %s16, 128, %s18, [#allocation3], 64, 64, 4
    $region5: #{tpu_custom_call.1} parent=1 // pred_fallthru
      _
    // Predicated region
    $region6: #{tpu_custom_call.1} parent=1 // pred_check
      _
    $region7: #{tpu_custom_call.1} parent=1 // pred_check_branch
      %25 = sbr.rel (0) target = $region9
    $region8: #{tpu_custom_call.1} parent=1 // pred_region
      %27 = vsyncadd [#allocation6], 0
      %s28 = sshll.u32 %s1, 4
      %s29 = int_to_ptr.hbm [resolvable:$true] %s28
      %s30 = sshll.u32 [#allocation5], 4
      %s31 = int_to_ptr.vmem [resolvable:$true] %s30
      %36 = dma.hbm_to_vmem [thread:$0]  %s29, 256, %s31, [#allocation6], 64, 64, 4
    $region9: #{tpu_custom_call.1} parent=1 // pred_fallthru
      _
    // Predicated region
    $region10: #{tpu_custom_call.1} parent=1 // pred_check
      _
    $region11: #{tpu_custom_call.1} parent=1 // pred_check_branch
      %38 = sbr.rel (0) target = $region13
    $region12: #{tpu_custom_call.1} parent=1 // pred_region
      _
    $region13: #{tpu_custom_call.1} parent=1 // pred_fallthru
      _
    // Predicated region
    $region14: #{tpu_custom_call.1} parent=1 // pred_check
      _
    $region15: #{tpu_custom_call.1} parent=1 // pred_check_branch
      %40 = sbr.rel (0) target = $region17
    $region16: #{tpu_custom_call.1} parent=1 // pred_region
      %42 = dma.done [#allocation3], 128
    $region17: #{tpu_custom_call.1} parent=1 // pred_fallthru
      _
    // Predicated region
    $region18: #{tpu_custom_call.1} parent=1 // pred_check
      _
    $region19: #{tpu_custom_call.1} parent=1 // pred_check_branch
      %44 = sbr.rel (0) target = $region21
    $region20: #{tpu_custom_call.1} parent=1 // pred_region
      %46 = dma.done [#allocation6], 256
    $region21: #{tpu_custom_call.1} parent=1 // pred_fallthru
      _
    %v48 = vld [vmem:[#allocation2] sm:$0xf]
    %v49 = vld [vmem:[#allocation2 + $0x4] sm:$0xf]
    %v50 = vld [vmem:[#allocation5] sm:$0xf]
    %v51 = vld [vmem:[#allocation5 + $0x4] sm:$0xf]
    %v52 = vld [vmem:[#allocation5 + $0x8] sm:$0xf]
    %v53 = vld [vmem:[#allocation5 + $0xc] sm:$0xf]
    %v54 = vld [vmem:[%s2] sm:$0x1]
    %v56 = vperm.slane %v54, 0
    %v60 = vunpack.c.l.b16 %v48
    %v61 = vunpack.c.l.b16 %v49
    %v62 = vpack.c.b16 %v61, %v60
    %v67 = vunpack.c.l.b16 %v50
    %v68 = vunpack.c.l.b16 %v51
    %v69 = vunpack.c.l.b16 %v52
    %v70 = vunpack.c.l.b16 %v53
    %v71 = vpack.c.b16 %v68, %v67
    %v72 = vpack.c.b16 %v70, %v69
    %vm75 = vcmask 261120
    %v77 = vsel %vm75, %v62, 0
    %79 = vmatpush.bf16.msra.mxu0 0
    %80 = vmatpush.bf16.msra.mxu0 0
    %81 = vmatpush.bf16.msra.mxu0 0
    %82 = vmatpush.bf16.msra.mxu0 0
    %83 = vmatpush.bf16.msra.mxu0 0
    %84 = vmatpush.bf16.msra.mxu0 0
    %85 = vmatpush.bf16.msra.mxu0 %v72
    %86 = vmatpush.bf16.msra.mxu0 %v71
    %87 = vmatmul.bf16.gmra.mxu0 %v77
    %v88 = vpop.f32.mrf.mxu0
    %v89 = vadd.f32 %v56, %v88
    %v90 = vpop.f32.mrf.mxu0
    %v91 = vadd.f32 %v56, %v90
    %92 = vdwg.mxu0
    %v93 = vmul.f32 %v89, 0.5
    %v94 = vmul.f32 %v91, 0.5
    %v95 = vmul.f32 %v89, 0.70710677
    %v96 = vmul.f32 %v91, 0.70710677
    %v97 = vmul.f32 %v95, %v95
    %v98 = vmin.f32 16.0, %v97
    %v99 = vmul.f32 %v98, 2.1237322e-06
    %v100 = vadd.f32 %v99, 0.00028619796
    %v101 = vmul.f32 %v98, %v100
    %v102 = vadd.f32 %v101, 0.0036580483
    %v103 = vmul.f32 %v98, %v102
    %v104 = vadd.f32 %v103, 0.05243302
    %v105 = vmul.f32 %v98, %v104
    %v106 = vadd.f32 %v105, 0.18741608
    %v107 = vmul.f32 %v98, %v106
    %v108 = vadd.f32 %v107, 1.1283791
    %v109 = vmul.f32 %v95, %v108
    %v110 = vmul.f32 %v98, 3.8918573e-05
    %v111 = vadd.f32 %v110, 0.001143296
    %v112 = vmul.f32 %v98, %v111
    %v113 = vadd.f32 %v112, 0.014752088
    %v114 = vmul.f32 %v98, %v113
    %v115 = vadd.f32 %v114, 0.112945676
    %v116 = vmul.f32 %v98, %v115
    %v117 = vadd.f32 %v116, 0.4994258
    %v118 = vmul.f32 %v98, %v117
    %v119 = vadd.f32 %v118, 1.0
    %v120 = vrcp.pop %v119
    %v121 = vmul.f32 %v119, %v120
    %v122 = vsub.f32 1.0, %v121
    %v123 = vmul.f32 %v120, %v122
    %v124 = vadd.f32 %v120, %v123
    %vm125 = vweird.f32 %v119
    %vm126 = vweird.f32 %v120
    %vm127 = vmor %vm125, %vm126
    %v128 = vsel %vm127, %v120, %v124
    %v129 = vand.u32 2147483647, %v119
    %vm130 = vcmp.eq.f32.partialorder %v129, 8.507059e+37
    %v131 = vand.u32 %v119, 2147483648
    %v132 = vor.u32 1.1754944e-38, %v131
    %v133 = vsel %vm130, %v132, %v128
    %v134 = vmul.f32 %v109, %v133
    %v135 = vmin.f32 %v134, 1.0
    %v136 = vmax.f32 %v135, -1.0
    %v137 = vmul.f32 %v96, %v96
    %v138 = vmin.f32 16.0, %v137
    %v139 = vmul.f32 %v138, 2.1237322e-06
    %v140 = vadd.f32 %v139, 0.00028619796
    %v141 = vmul.f32 %v138, %v140
    %v142 = vadd.f32 %v141, 0.0036580483
    %v143 = vmul.f32 %v138, %v142
    %v144 = vadd.f32 %v143, 0.05243302
    %v145 = vmul.f32 %v138, %v144
    %v146 = vadd.f32 %v145, 0.18741608
    %v147 = vmul.f32 %v138, %v146
    %v148 = vadd.f32 %v147, 1.1283791
    %v149 = vmul.f32 %v96, %v148
    %v150 = vmul.f32 %v138, 3.8918573e-05
    %v151 = vadd.f32 %v150, 0.001143296
    %v152 = vmul.f32 %v138, %v151
    %v153 = vadd.f32 %v152, 0.014752088
    %v154 = vmul.f32 %v138, %v153
    %v155 = vadd.f32 %v154, 0.112945676
    %v156 = vmul.f32 %v138, %v155
    %v157 = vadd.f32 %v156, 0.4994258
    %v158 = vmul.f32 %v138, %v157
    %v159 = vadd.f32 %v158, 1.0
    %v160 = vrcp.pop %v159
    %v161 = vmul.f32 %v159, %v160
    %v162 = vsub.f32 1.0, %v161
    %v163 = vmul.f32 %v160, %v162
    %v164 = vadd.f32 %v160, %v163
    %vm165 = vweird.f32 %v159
    %vm166 = vweird.f32 %v160
    %vm167 = vmor %vm165, %vm166
    %v168 = vsel %vm167, %v160, %v164
    %v169 = vand.u32 2147483647, %v159
    %vm170 = vcmp.eq.f32.partialorder %v169, 8.507059e+37
    %v171 = vand.u32 %v159, 2147483648
    %v172 = vor.u32 1.1754944e-38, %v171
    %v173 = vsel %vm170, %v172, %v168
    %v174 = vmul.f32 %v149, %v173
    %v175 = vmin.f32 %v174, 1.0
    %v176 = vmax.f32 %v175, -1.0
    %v177 = vadd.f32 %v136, 1.0
    %v178 = vadd.f32 %v176, 1.0
    %v179 = vmul.f32 %v93, %v177
    %v180 = vmul.f32 %v94, %v178
    %v181 = vpack.c.bf16 %v179, %v179
    %v182 = vpack.c.bf16 %v180, %v180
    %183 = vst [vmem:[#allocation7] sm:$0xf] %v181
    %184 = vst [vmem:[#allocation7 + $0x4] sm:$0xf] %v182
    // Predicated region
    $region22: #{tpu_custom_call.1} parent=1 // pred_check
      _
    $region23: #{tpu_custom_call.1} parent=1 // pred_check_branch
      %186 = sbr.rel (0) target = $region25
    $region24: #{tpu_custom_call.1} parent=1 // pred_region
      %188 = vsyncadd [#allocation4], 0
      %s189 = sshll.u32 [#allocation7], 4
      %s190 = int_to_ptr.vmem [resolvable:$true] %s189
      %s191 = sshll.u32 %s3, 4
      %s192 = int_to_ptr.hbm [resolvable:$true] %s191
      %197 = dma.vmem_to_hbm [thread:$0]  %s190, 128, %s192, [#allocation4], 64, 64, 4
    $region25: #{tpu_custom_call.1} parent=1 // pred_fallthru
      _
    // Predicated region
    $region26: #{tpu_custom_call.1} parent=1 // pred_check
      _
    $region27: #{tpu_custom_call.1} parent=1 // pred_check_branch
      %199 = sbr.rel (0) target = $region29
    $region28: #{tpu_custom_call.1} parent=1 // pred_region
      %201 = dma.done [#allocation4], 128
    $region29: #{tpu_custom_call.1} parent=1 // pred_fallthru
      _
    %202 = vsyncpa [#allocation3], 1
    %203 = vsyncpa [#allocation6], 1
    %204 = vsyncpa [#allocation4], 1

</llo_original>
